<compile_context>
chip_gen: v5e
topology: v5e:2x2
jax: 0.10.0
libtpu: 0.0.40
codegen_flags: <defaults>
</compile_context>

<pallas_src>
import math

import jax
import jax.numpy as jnp
from jax.experimental import pallas as pl
from jax.experimental.pallas import tpu as pltpu


TM_DEFAULT = 1024
TK_DEFAULT = 2048


def _round_up(x, m):
    return ((x + m - 1) // m) * m


def _vmem_limit_bytes():
    """Scoped-VMEM limit: generous on v5e/v6e (128 MiB phys), conservative on v7x (64 MiB)."""
    try:
        cap = pltpu.get_tpu_info().vmem_capacity_bytes
    except Exception:
        cap = 64 * 1024 * 1024
    return min(96 * 1024 * 1024, (cap * 3) // 4)


def _select_tiles(n, tm=TM_DEFAULT, tk=TK_DEFAULT):
    """Clamp tiles to the (128-aligned) problem and keep >= 2 row tiles when possible
    so v7x's two TensorCores both get work on the 'parallel' row axis."""
    n128 = _round_up(n, 128)
    tm = min(tm, n128)
    tk = min(tk, n128)
    if n128 // tm < 2 and n128 >= 256:
        tm = _round_up((n128 + 1) // 2, 128)
    return tm, tk


def prepare_gcn_adjacency(adj, *, tm=TM_DEFAULT, tk=TK_DEFAULT):
    """One-time preprocessing: cast the (N, N) adjacency to bf16 and zero-pad it to the
    tile grid. Do this ONCE per graph (not per forward call) - it is pure HBM traffic."""
    n = adj.shape[0]
    assert adj.shape == (n, n)
    tm, tk = _select_tiles(n, tm, tk)
    n_rows = _round_up(n, tm)
    n_cols = _round_up(n, tk)
    a = adj.astype(jnp.bfloat16)
    if (n_rows, n_cols) != (n, n):
        a = jnp.pad(a, ((0, n_rows - n), (0, n_cols - n)))
    return a, (n, tm, tk)


# ---------------------------------------------------------------------------
# Kernel 1: support = X @ W        (row-tiled, W resident, bf16 MXU, f32 accumulate)
# ---------------------------------------------------------------------------
def _support_kernel(x_ref, w_ref, s_ref):
    s_ref[...] = jnp.dot(
        x_ref[...], w_ref[...], preferred_element_type=jnp.float32
    ).astype(s_ref.dtype)


# ---------------------------------------------------------------------------
# Kernel 2: out = relu(A @ support)   k-tiled reduction, f32 VMEM accumulator
#   a_ref : (tm, tk)     bf16 adjacency tile
#   s_ref : (tk, f_out)  bf16 support tile
#   o_ref : (tm, f_out)  out_dtype
#   acc   : (tm, f_out)  f32 scratch (resident across the k axis)
# ---------------------------------------------------------------------------
def _aggregate_kernel(a_ref, s_ref, o_ref, acc_ref):
    k = pl.program_id(1)

    @pl.when(k == 0)
    def _():
        acc_ref[...] = jnp.zeros_like(acc_ref)

    acc_ref[...] += jnp.dot(
        a_ref[...], s_ref[...], preferred_element_type=jnp.float32
    )

    @pl.when(k == pl.num_programs(1) - 1)
    def _():
        o_ref[...] = jnp.maximum(acc_ref[...], 0.0).astype(o_ref.dtype)


def graph_convolution_forward(
    x,
    adj,
    weight,
    *,
    adj_meta=None,
    tm=TM_DEFAULT,
    tk=TK_DEFAULT,
    out_dtype=jnp.bfloat16,
):
    """Pallas implementation of GraphConvolution.forward (dropout p=0, act=relu).

    `adj` is either the raw (N, N) adjacency, or the pre-cast/pre-padded array returned
    by prepare_gcn_adjacency() together with its meta (preferred: hoists the N^2
    cast+pad out of the per-call path)."""
    if adj_meta is None:
        adj, adj_meta = prepare_gcn_adjacency(adj, tm=tm, tk=tk)
    n, tm, tk = adj_meta
    n_rows, n_cols = adj.shape
    assert n_rows % tm == 0 and n_cols % tk == 0

    f_in = x.shape[1]
    f_in_w, f_out = weight.shape
    assert f_in == f_in_w and x.shape[0] == n

    vmem_limit = _vmem_limit_bytes()

    # Small per-call casts/pads (O(N*F), not O(N^2)).
    x_bf = x.astype(jnp.bfloat16)
    if n_cols != n:
        x_bf = jnp.pad(x_bf, ((0, n_cols - n), (0, 0)))
    w_bf = weight.astype(jnp.bfloat16)

    # --- support = X @ W ----------------------------------------------------
    support = pl.pallas_call(
        _support_kernel,
        out_shape=jax.ShapeDtypeStruct((n_cols, f_out), jnp.bfloat16),
        grid_spec=pltpu.PrefetchScalarGridSpec(
            num_scalar_prefetch=0,
            grid=(n_cols // tk,),
            in_specs=[
                pl.BlockSpec((tk, f_in), lambda k: (k, 0)),
                pl.BlockSpec((f_in, f_out), lambda k: (0, 0)),
            ],
            out_specs=pl.BlockSpec((tk, f_out), lambda k: (k, 0)),
        ),
        compiler_params=pltpu.CompilerParams(
            dimension_semantics=("parallel",),
            vmem_limit_bytes=vmem_limit,
        ),
    )(x_bf, w_bf)

    # --- out = relu(A @ support) --------------------------------------------
    out = pl.pallas_call(
        _aggregate_kernel,
        out_shape=jax.ShapeDtypeStruct((n_rows, f_out), out_dtype),
        grid_spec=pltpu.PrefetchScalarGridSpec(
            num_scalar_prefetch=0,
            grid=(n_rows // tm, n_cols // tk),
            in_specs=[
                pl.BlockSpec((tm, tk), lambda i, k: (i, k)),      # A tile
                pl.BlockSpec((tk, f_out), lambda i, k: (k, 0)),   # support tile
            ],
            out_specs=pl.BlockSpec((tm, f_out), lambda i, k: (i, 0)),
            scratch_shapes=[pltpu.VMEM((tm, f_out), jnp.float32)],
        ),
        compiler_params=pltpu.CompilerParams(
            dimension_semantics=("parallel", "arbitrary"),
            vmem_limit_bytes=vmem_limit,
        ),
    )(adj, support)

    return out[:n]


def xavier_uniform(key, shape, dtype=jnp.float32):
    fan_in, fan_out = shape
    bound = math.sqrt(6.0 / (fan_in + fan_out))
    return jax.random.uniform(key, shape, dtype=dtype, minval=-bound, maxval=bound)


if __name__ == "__main__":
    key = jax.random.PRNGKey(0)
    k_x, k_adj, k_w = jax.random.split(key, 3)

    N, F_IN, F_OUT = 256, 128, 64  # small shapes; f_out <= f_in as in SEDR's GCN stack

    x = jax.random.normal(k_x, (N, F_IN), dtype=jnp.float32)

    # Symmetric-normalized dense adjacency (as produced by SEDR preprocessing).
    a = (jax.random.uniform(k_adj, (N, N)) < 0.05).astype(jnp.float32)
    a = jnp.maximum(a, a.T) + jnp.eye(N, dtype=jnp.float32)
    deg = jnp.sum(a, axis=1)
    d_inv_sqrt = 1.0 / jnp.sqrt(deg)
    adj = a * d_inv_sqrt[:, None] * d_inv_sqrt[None, :]

    weight = xavier_uniform(k_w, (F_IN, F_OUT))

    # One-time graph preprocessing (bf16 cast + tile-grid pad), reused every call.
    adj_prepared, adj_meta = prepare_gcn_adjacency(adj)

    out = graph_convolution_forward(x, adj_prepared, weight, adj_meta=adj_meta)
    jax.block_until_ready(out)

    # Reference check in plain JAX (f32). bf16 MXU operands + bf16 output change
    # rounding slightly, so tolerance is loosened accordingly.
    ref = jnp.maximum(adj @ (x @ weight), 0.0)
    assert out.shape == (N, F_OUT)
    assert jnp.allclose(out.astype(jnp.float32), ref, atol=5e-2, rtol=5e-2), (
        float(jnp.max(jnp.abs(out.astype(jnp.float32) - ref)))
    )

    print("KERNEL_OK")
</pallas_src>

<mosaic_0001>
module attributes {stable_mosaic.version = 11 : i64} {
  func.func @_support_kernel(%arg0: i32, %arg1: memref<256x128xbf16, #tpu.memory_space<vmem>>, %arg2: memref<128x64xbf16, #tpu.memory_space<vmem>>, %arg3: memref<256x64xbf16, #tpu.memory_space<vmem>>) attributes {dimension_semantics = [#tpu.dimension_semantics<parallel>], iteration_bounds = array<i64: 1>, scalar_prefetch = 0 : i64, scratch_operands = 0 : i64, tpu.core_type = #tpu.core_type<tc>, window_params = [{transform_indices = @transform_0, window_bounds = array<i64: 256, 128>}, {pipeline_mode = #tpu.pipeline_mode<synchronous>, transform_indices = @transform_1, window_bounds = array<i64: 128, 64>}, {transform_indices = @transform_2, window_bounds = array<i64: 256, 64>}]} {
    %c0 = arith.constant 0 : index
    %c0_0 = arith.constant 0 : index
    %0 = vector.load %arg1[%c0, %c0_0] : memref<256x128xbf16, #tpu.memory_space<vmem>>, vector<256x128xbf16>
    %c0_1 = arith.constant 0 : index
    %c0_2 = arith.constant 0 : index
    %1 = vector.load %arg2[%c0_1, %c0_2] : memref<128x64xbf16, #tpu.memory_space<vmem>>, vector<128x64xbf16>
    %cst = arith.constant dense<0.000000e+00> : vector<256x64xf32>
    %2 = tpu.matmul %0, %1, %cst {dimension_numbers = #tpu.dot_dimension_numbers<[1], [0], [0], [1], [0, 0, 1, 1], [], []>} : vector<256x128xbf16>, vector<128x64xbf16>, vector<256x64xf32> -> vector<256x64xf32>
    %3 = arith.truncf %2 : vector<256x64xf32> to vector<256x64xbf16>
    %c0_3 = arith.constant 0 : index
    %c0_4 = arith.constant 0 : index
    %4 = vector.load %arg3[%c0_3, %c0_4] : memref<256x64xbf16, #tpu.memory_space<vmem>>, vector<256x64xbf16>
    tpu.vector_store %arg3[%c0_3, %c0_4], %3 {strides = array<i32>} : memref<256x64xbf16, #tpu.memory_space<vmem>>, vector<256x64xbf16>,
    return
  }
  func.func @transform_0(%arg0: i32) -> (i32, i32) {
    %c0_i32 = arith.constant 0 : i32
    %c0_i32_0 = arith.constant 0 : i32
    return %arg0, %c0_i32 : i32, i32
  }
  func.func @transform_1(%arg0: i32) -> (i32, i32) {
    %c0_i32 = arith.constant 0 : i32
    %c0_i32_0 = arith.constant 0 : i32
    %c0_i32_1 = arith.constant 0 : i32
    return %c0_i32, %c0_i32_0 : i32, i32
  }
  func.func @transform_2(%arg0: i32) -> (i32, i32) {
    %c0_i32 = arith.constant 0 : i32
    %c0_i32_0 = arith.constant 0 : i32
    return %arg0, %c0_i32 : i32, i32
  }
}

</mosaic_0001>

<llo_original>
// kernel: tpu_custom_call.1
$region0: #{tpu_custom_call.1}
  #allocation0 [shape = 'u32[]', space=smem, size = 0x4, offset = 0x4, fixed_abs, tag = 'smem constant byte address 0x4 - core index']
  #allocation1 [shape = 'u32[72,128]{1,0:T(1,128)}', space=vmem, size = 0x9000, scoped, tag = 'internal scratch']
  %s0 = inlined_call_operand.hbm [shape: bf16[256,128], index: 0, kind: input, shape index: {}]
  %s1 = inlined_call_operand.vmem [shape: bf16[128,64], index: 1, kind: input, shape index: {}]
  %s2 = inlined_call_operand.vmem [shape: bf16[256,64], index: 2, kind: output, shape index: {}]
  %s3 = sld [smem:[#allocation0]]
  $region22: #{tpu_custom_call.1} parent=0
    _
  %s5 = ssub.s32 1, %s3
  %s6 = scalar_select 0, %s5, %s3
  $region1: #{tpu_custom_call.1} parent=0
    #allocation2 [shape = 'u8[65536]{0}', space=vmem, size = 0x10000, scoped, tag = 'input window, operand 0, single buffered']
    #allocation3 [shape = 's32[1]{0}', space=sflag, size = 0x4, scoped, tag = 'scoped memory for tpu_custom_call.1']
    %7 = vsyncpa [#allocation3], 0
    // Predicated region
    $region2: #{tpu_custom_call.1} parent=1 // pred_check
      _
    $region3: #{tpu_custom_call.1} parent=1 // pred_check_branch
      %9 = sbr.rel (0) target = $region5
    $region4: #{tpu_custom_call.1} parent=1 // pred_region
      %11 = vsyncadd [#allocation3], 0
      %s12 = sshll.u32 %s0, 4
      %s13 = int_to_ptr.hbm [resolvable:$true] %s12
      %s14 = sshll.u32 [#allocation2], 4
      %s15 = int_to_ptr.vmem [resolvable:$true] %s14
      %20 = dma.hbm_to_vmem [thread:$0]  %s13, 2048, %s15, [#allocation3], 64, 64, 4
    $region5: #{tpu_custom_call.1} parent=1 // pred_fallthru
      _
    // Predicated region
    $region6: #{tpu_custom_call.1} parent=1 // pred_check
      _
    $region7: #{tpu_custom_call.1} parent=1 // pred_check_branch
      %22 = sbr.rel (0) target = $region9
    $region8: #{tpu_custom_call.1} parent=1 // pred_region
      _
    $region9: #{tpu_custom_call.1} parent=1 // pred_fallthru
      _
    // Predicated region
    $region10: #{tpu_custom_call.1} parent=1 // pred_check
      _
    $region11: #{tpu_custom_call.1} parent=1 // pred_check_branch
      %24 = sbr.rel (0) target = $region13
    $region12: #{tpu_custom_call.1} parent=1 // pred_region
      %26 = dma.done [#allocation3], 2048
    $region13: #{tpu_custom_call.1} parent=1 // pred_fallthru
      _
    %v27 = vld [vmem:[#allocation2] sm:$0xf]
    %v28 = vld [vmem:[#allocation2 + $0x4] sm:$0xf]
    %v29 = vld [vmem:[#allocation2 + $0x8] sm:$0xf]
    %v30 = vld [vmem:[#allocation2 + $0xc] sm:$0xf]
    %v31 = vld [vmem:[#allocation2 + $0x10] sm:$0xf]
    %v32 = vld [vmem:[#allocation2 + $0x14] sm:$0xf]
    %v33 = vld [vmem:[#allocation2 + $0x18] sm:$0xf]
    %v34 = vld [vmem:[#allocation2 + $0x1c] sm:$0xf]
    %v35 = vld [vmem:[#allocation2 + $0x20] sm:$0xf]
    %v36 = vld [vmem:[#allocation2 + $0x24] sm:$0xf]
    %v37 = vld [vmem:[#allocation2 + $0x28] sm:$0xf]
    %v38 = vld [vmem:[#allocation2 + $0x2c] sm:$0xf]
    %v39 = vld [vmem:[#allocation2 + $0x30] sm:$0xf]
    %v40 = vld [vmem:[#allocation2 + $0x34] sm:$0xf]
    %v41 = vld [vmem:[#allocation2 + $0x38] sm:$0xf]
    %v42 = vld [vmem:[#allocation2 + $0x3c] sm:$0xf]
    %v43 = vld [vmem:[#allocation2 + $0x40] sm:$0xf]
    %v44 = vld [vmem:[#allocation2 + $0x44] sm:$0xf]
    %v45 = vld [vmem:[#allocation2 + $0x48] sm:$0xf]
    %v46 = vld [vmem:[#allocation2 + $0x4c] sm:$0xf]
    %v47 = vld [vmem:[#allocation2 + $0x50] sm:$0xf]
    %v48 = vld [vmem:[#allocation2 + $0x54] sm:$0xf]
    %v49 = vld [vmem:[#allocation2 + $0x58] sm:$0xf]
    %v50 = vld [vmem:[#allocation2 + $0x5c] sm:$0xf]
    %v51 = vld [vmem:[#allocation2 + $0x60] sm:$0xf]
    %v52 = vld [vmem:[#allocation2 + $0x64] sm:$0xf]
    %v53 = vld [vmem:[#allocation2 + $0x68] sm:$0xf]
    %v54 = vld [vmem:[#allocation2 + $0x6c] sm:$0xf]
    %v55 = vld [vmem:[#allocation2 + $0x70] sm:$0xf]
    %v56 = vld [vmem:[#allocation2 + $0x74] sm:$0xf]
    %v57 = vld [vmem:[#allocation2 + $0x78] sm:$0xf]
    %v58 = vld [vmem:[#allocation2 + $0x7c] sm:$0xf]
    %v59 = vld [vmem:[%s1] sm:$0xf]
    %v60 = vld [vmem:[%s1 + $0x4] sm:$0xf]
    %v61 = vld [vmem:[%s1 + $0x8] sm:$0xf]
    %v62 = vld [vmem:[%s1 + $0xc] sm:$0xf]
    %v63 = vld [vmem:[%s1 + $0x10] sm:$0xf]
    %v64 = vld [vmem:[%s1 + $0x14] sm:$0xf]
    %v65 = vld [vmem:[%s1 + $0x18] sm:$0xf]
    %v66 = vld [vmem:[%s1 + $0x1c] sm:$0xf]
    %v67 = vld [vmem:[%s1 + $0x20] sm:$0xf]
    %v68 = vld [vmem:[%s1 + $0x24] sm:$0xf]
    %v69 = vld [vmem:[%s1 + $0x28] sm:$0xf]
    %v70 = vld [vmem:[%s1 + $0x2c] sm:$0xf]
    %v71 = vld [vmem:[%s1 + $0x30] sm:$0xf]
    %v72 = vld [vmem:[%s1 + $0x34] sm:$0xf]
    %v73 = vld [vmem:[%s1 + $0x38] sm:$0xf]
    %v74 = vld [vmem:[%s1 + $0x3c] sm:$0xf]
    %v107 = vunpack.c.l.b16 %v27
    %v108 = vunpack.c.l.b16 %v28
    %v109 = vunpack.c.l.b16 %v29
    %v110 = vunpack.c.l.b16 %v30
    %v111 = vunpack.c.l.b16 %v31
    %v112 = vunpack.c.l.b16 %v32
    %v113 = vunpack.c.l.b16 %v33
    %v114 = vunpack.c.l.b16 %v34
    %v115 = vunpack.c.l.b16 %v35
    %v116 = vunpack.c.l.b16 %v36
    %v117 = vunpack.c.l.b16 %v37
    %v118 = vunpack.c.l.b16 %v38
    %v119 = vunpack.c.l.b16 %v39
    %v120 = vunpack.c.l.b16 %v40
    %v121 = vunpack.c.l.b16 %v41
    %v122 = vunpack.c.l.b16 %v42
    %v123 = vunpack.c.l.b16 %v43
    %v124 = vunpack.c.l.b16 %v44
    %v125 = vunpack.c.l.b16 %v45
    %v126 = vunpack.c.l.b16 %v46
    %v127 = vunpack.c.l.b16 %v47
    %v128 = vunpack.c.l.b16 %v48
    %v129 = vunpack.c.l.b16 %v49
    %v130 = vunpack.c.l.b16 %v50
    %v131 = vunpack.c.l.b16 %v51
    %v132 = vunpack.c.l.b16 %v52
    %v133 = vunpack.c.l.b16 %v53
    %v134 = vunpack.c.l.b16 %v54
    %v135 = vunpack.c.l.b16 %v55
    %v136 = vunpack.c.l.b16 %v56
    %v137 = vunpack.c.l.b16 %v57
    %v138 = vunpack.c.l.b16 %v58
    %v139 = vpack.c.b16 %v108, %v107
    %v140 = vpack.c.b16 %v110, %v109
    %v141 = vpack.c.b16 %v112, %v111
    %v142 = vpack.c.b16 %v114, %v113
    %v143 = vpack.c.b16 %v116, %v115
    %v144 = vpack.c.b16 %v118, %v117
    %v145 = vpack.c.b16 %v120, %v119
    %v146 = vpack.c.b16 %v122, %v121
    %v147 = vpack.c.b16 %v124, %v123
    %v148 = vpack.c.b16 %v126, %v125
    %v149 = vpack.c.b16 %v128, %v127
    %v150 = vpack.c.b16 %v130, %v129
    %v151 = vpack.c.b16 %v132, %v131
    %v152 = vpack.c.b16 %v134, %v133
    %v153 = vpack.c.b16 %v136, %v135
    %v154 = vpack.c.b16 %v138, %v137
    %v187 = vunpack.c.l.b16 %v59
    %v188 = vunpack.c.l.b16 %v60
    %v189 = vunpack.c.l.b16 %v61
    %v190 = vunpack.c.l.b16 %v62
    %v191 = vunpack.c.l.b16 %v63
    %v192 = vunpack.c.l.b16 %v64
    %v193 = vunpack.c.l.b16 %v65
    %v194 = vunpack.c.l.b16 %v66
    %v195 = vunpack.c.l.b16 %v67
    %v196 = vunpack.c.l.b16 %v68
    %v197 = vunpack.c.l.b16 %v69
    %v198 = vunpack.c.l.b16 %v70
    %v199 = vunpack.c.l.b16 %v71
    %v200 = vunpack.c.l.b16 %v72
    %v201 = vunpack.c.l.b16 %v73
    %v202 = vunpack.c.l.b16 %v74
    %v203 = vpack.c.b16 %v188, %v187
    %v204 = vpack.c.b16 %v190, %v189
    %v205 = vpack.c.b16 %v192, %v191
    %v206 = vpack.c.b16 %v194, %v193
    %v207 = vpack.c.b16 %v196, %v195
    %v208 = vpack.c.b16 %v198, %v197
    %v209 = vpack.c.b16 %v200, %v199
    %v210 = vpack.c.b16 %v202, %v201
    %219 = vmatpush.bf16.msra.mxu0 %v210
    %220 = vmatpush.bf16.msra.mxu0 %v209
    %221 = vmatpush.bf16.msra.mxu0 %v208
    %222 = vmatpush.bf16.msra.mxu0 %v207
    %223 = vmatpush.bf16.msra.mxu0 %v206
    %224 = vmatpush.bf16.msra.mxu0 %v205
    %225 = vmatpush.bf16.msra.mxu0 %v204
    %226 = vmatpush.bf16.msra.mxu0 %v203
    %227 = vmatmul.bf16.gmra.mxu0 %v139
    %v228 = vpop.f32.mrf.mxu0
    %v229 = vadd.f32 0.0, %v228
    %v230 = vpop.f32.mrf.mxu0
    %v231 = vadd.f32 0.0, %v230
    %232 = vmatmul.bf16.gmra.mxu0 %v140
    %v233 = vpop.f32.mrf.mxu0
    %v234 = vadd.f32 0.0, %v233
    %v235 = vpop.f32.mrf.mxu0
    %v236 = vadd.f32 0.0, %v235
    %237 = vmatmul.bf16.gmra.mxu0 %v141
    %v238 = vpop.f32.mrf.mxu0
    %v239 = vadd.f32 0.0, %v238
    %v240 = vpop.f32.mrf.mxu0
    %v241 = vadd.f32 0.0, %v240
    %242 = vmatmul.bf16.gmra.mxu0 %v142
    %v243 = vpop.f32.mrf.mxu0
    %v244 = vadd.f32 0.0, %v243
    %v245 = vpop.f32.mrf.mxu0
    %v246 = vadd.f32 0.0, %v245
    %247 = vmatmul.bf16.gmra.mxu0 %v143
    %v248 = vpop.f32.mrf.mxu0
    %v249 = vadd.f32 0.0, %v248
    %v250 = vpop.f32.mrf.mxu0
    %v251 = vadd.f32 0.0, %v250
    %252 = vmatmul.bf16.gmra.mxu0 %v144
    %v253 = vpop.f32.mrf.mxu0
    %v254 = vadd.f32 0.0, %v253
    %v255 = vpop.f32.mrf.mxu0
    %v256 = vadd.f32 0.0, %v255
    %257 = vmatmul.bf16.gmra.mxu0 %v145
    %v258 = vpop.f32.mrf.mxu0
    %v259 = vadd.f32 0.0, %v258
    %v260 = vpop.f32.mrf.mxu0
    %v261 = vadd.f32 0.0, %v260
    %262 = vmatmul.bf16.gmra.mxu0 %v146
    %v263 = vpop.f32.mrf.mxu0
    %v264 = vadd.f32 0.0, %v263
    %v265 = vpop.f32.mrf.mxu0
    %v266 = vadd.f32 0.0, %v265
    %267 = vmatmul.bf16.gmra.mxu0 %v147
    %v268 = vpop.f32.mrf.mxu0
    %v269 = vadd.f32 0.0, %v268
    %v270 = vpop.f32.mrf.mxu0
    %v271 = vadd.f32 0.0, %v270
    %272 = vmatmul.bf16.gmra.mxu0 %v148
    %v273 = vpop.f32.mrf.mxu0
    %v274 = vadd.f32 0.0, %v273
    %v275 = vpop.f32.mrf.mxu0
    %v276 = vadd.f32 0.0, %v275
    %277 = vmatmul.bf16.gmra.mxu0 %v149
    %v278 = vpop.f32.mrf.mxu0
    %v279 = vadd.f32 0.0, %v278
    %v280 = vpop.f32.mrf.mxu0
    %v281 = vadd.f32 0.0, %v280
    %282 = vmatmul.bf16.gmra.mxu0 %v150
    %v283 = vpop.f32.mrf.mxu0
    %v284 = vadd.f32 0.0, %v283
    %v285 = vpop.f32.mrf.mxu0
    %v286 = vadd.f32 0.0, %v285
    %287 = vmatmul.bf16.gmra.mxu0 %v151
    %v288 = vpop.f32.mrf.mxu0
    %v289 = vadd.f32 0.0, %v288
    %v290 = vpop.f32.mrf.mxu0
    %v291 = vadd.f32 0.0, %v290
    %292 = vmatmul.bf16.gmra.mxu0 %v152
    %v293 = vpop.f32.mrf.mxu0
    %v294 = vadd.f32 0.0, %v293
    %v295 = vpop.f32.mrf.mxu0
    %v296 = vadd.f32 0.0, %v295
    %297 = vmatmul.bf16.gmra.mxu0 %v153
    %v298 = vpop.f32.mrf.mxu0
    %v299 = vadd.f32 0.0, %v298
    %v300 = vpop.f32.mrf.mxu0
    %v301 = vadd.f32 0.0, %v300
    %302 = vmatmul.bf16.gmra.mxu0 %v154
    %v303 = vpop.f32.mrf.mxu0
    %v304 = vadd.f32 0.0, %v303
    %v305 = vpop.f32.mrf.mxu0
    %v306 = vadd.f32 0.0, %v305
    %307 = vdwg.mxu0
    %v308 = vpack.c.bf16 %v229, %v229
    %v309 = vpack.c.bf16 %v231, %v231
    %v310 = vpack.c.bf16 %v234, %v234
    %v311 = vpack.c.bf16 %v236, %v236
    %v312 = vpack.c.bf16 %v239, %v239
    %v313 = vpack.c.bf16 %v241, %v241
    %v314 = vpack.c.bf16 %v244, %v244
    %v315 = vpack.c.bf16 %v246, %v246
    %v316 = vpack.c.bf16 %v249, %v249
    %v317 = vpack.c.bf16 %v251, %v251
    %v318 = vpack.c.bf16 %v254, %v254
    %v319 = vpack.c.bf16 %v256, %v256
    %v320 = vpack.c.bf16 %v259, %v259
    %v321 = vpack.c.bf16 %v261, %v261
    %v322 = vpack.c.bf16 %v264, %v264
    %v323 = vpack.c.bf16 %v266, %v266
    %v324 = vpack.c.bf16 %v269, %v269
    %v325 = vpack.c.bf16 %v271, %v271
    %v326 = vpack.c.bf16 %v274, %v274
    %v327 = vpack.c.bf16 %v276, %v276
    %v328 = vpack.c.bf16 %v279, %v279
    %v329 = vpack.c.bf16 %v281, %v281
    %v330 = vpack.c.bf16 %v284, %v284
    %v331 = vpack.c.bf16 %v286, %v286
    %v332 = vpack.c.bf16 %v289, %v289
    %v333 = vpack.c.bf16 %v291, %v291
    %v334 = vpack.c.bf16 %v294, %v294
    %v335 = vpack.c.bf16 %v296, %v296
    %v336 = vpack.c.bf16 %v299, %v299
    %v337 = vpack.c.bf16 %v301, %v301
    %v338 = vpack.c.bf16 %v304, %v304
    %v339 = vpack.c.bf16 %v306, %v306
    %vm340 = vcmask 519168
    %341 = vst.msk [vmem:[%s2] sm:$0xf] %vm340, %v308
    %342 = vst.msk [vmem:[%s2 + $0x4] sm:$0xf] %vm340, %v309
    %343 = vst.msk [vmem:[%s2 + $0x8] sm:$0xf] %vm340, %v310
    %344 = vst.msk [vmem:[%s2 + $0xc] sm:$0xf] %vm340, %v311
    %345 = vst.msk [vmem:[%s2 + $0x10] sm:$0xf] %vm340, %v312
    %346 = vst.msk [vmem:[%s2 + $0x14] sm:$0xf] %vm340, %v313
    %347 = vst.msk [vmem:[%s2 + $0x18] sm:$0xf] %vm340, %v314
    %348 = vst.msk [vmem:[%s2 + $0x1c] sm:$0xf] %vm340, %v315
    %349 = vst.msk [vmem:[%s2 + $0x20] sm:$0xf] %vm340, %v316
    %350 = vst.msk [vmem:[%s2 + $0x24] sm:$0xf] %vm340, %v317
    %351 = vst.msk [vmem:[%s2 + $0x28] sm:$0xf] %vm340, %v318
    %352 = vst.msk [vmem:[%s2 + $0x2c] sm:$0xf] %vm340, %v319
    %353 = vst.msk [vmem:[%s2 + $0x30] sm:$0xf] %vm340, %v320
    %354 = vst.msk [vmem:[%s2 + $0x34] sm:$0xf] %vm340, %v321
    %355 = vst.msk [vmem:[%s2 + $0x38] sm:$0xf] %vm340, %v322
    %356 = vst.msk [vmem:[%s2 + $0x3c] sm:$0xf] %vm340, %v323
    %357 = vst.msk [vmem:[%s2 + $0x40] sm:$0xf] %vm340, %v324
    %358 = vst.msk [vmem:[%s2 + $0x44] sm:$0xf] %vm340, %v325
    %359 = vst.msk [vmem:[%s2 + $0x48] sm:$0xf] %vm340, %v326
    %360 = vst.msk [vmem:[%s2 + $0x4c] sm:$0xf] %vm340, %v327
    %361 = vst.msk [vmem:[%s2 + $0x50] sm:$0xf] %vm340, %v328
    %362 = vst.msk [vmem:[%s2 + $0x54] sm:$0xf] %vm340, %v329
    %363 = vst.msk [vmem:[%s2 + $0x58] sm:$0xf] %vm340, %v330
    %364 = vst.msk [vmem:[%s2 + $0x5c] sm:$0xf] %vm340, %v331
    %365 = vst.msk [vmem:[%s2 + $0x60] sm:$0xf] %vm340, %v332
    %366 = vst.msk [vmem:[%s2 + $0x64] sm:$0xf] %vm340, %v333
    %367 = vst.msk [vmem:[%s2 + $0x68] sm:$0xf] %vm340, %v334
    %368 = vst.msk [vmem:[%s2 + $0x6c] sm:$0xf] %vm340, %v335
    %369 = vst.msk [vmem:[%s2 + $0x70] sm:$0xf] %vm340, %v336
    %370 = vst.msk [vmem:[%s2 + $0x74] sm:$0xf] %vm340, %v337
    %371 = vst.msk [vmem:[%s2 + $0x78] sm:$0xf] %vm340, %v338
    %372 = vst.msk [vmem:[%s2 + $0x7c] sm:$0xf] %vm340, %v339
    // Predicated region
    $region14: #{tpu_custom_call.1} parent=1 // pred_check
      _
    $region15: #{tpu_custom_call.1} parent=1 // pred_check_branch
      %374 = sbr.rel (0) target = $region17
    $region16: #{tpu_custom_call.1} parent=1 // pred_region
      _
    $region17: #{tpu_custom_call.1} parent=1 // pred_fallthru
      _
    // Predicated region
    $region18: #{tpu_custom_call.1} parent=1 // pred_check
      _
    $region19: #{tpu_custom_call.1} parent=1 // pred_check_branch
      %376 = sbr.rel (0) target = $region21
    $region20: #{tpu_custom_call.1} parent=1 // pred_region
      _
    $region21: #{tpu_custom_call.1} parent=1 // pred_fallthru
      _
    %377 = vsyncpa [#allocation3], 1

</llo_original>
